<compile_context>
chip_gen: v6e
topology: v6e:2x2x1
jax: 0.10.0
libtpu: 0.0.40
codegen_flags: <defaults>
</compile_context>

<pallas_src>
from functools import partial

import jax
import jax.numpy as jnp
import numpy as np
from jax import lax
from jax.experimental import pallas as pl
from jax.experimental.pallas import tpu as pltpu


_MIN_GRID_STEPS = 8          # >= 2 TensorCores (v7x) x ~4 pipelined steps each
_TARGET_BLOCK_BYTES = 8 << 20  # keep input blocks in the multi-MiB range


def _attention_kernel(x_ref, w_ref, m_ref, rep_ref, attn_ref, attn_sc,
                      *, h_chunk, l_chunk):
    # x_ref:   (Bt, L, H)  input block
    # w_ref:   (1, H)      shared attention weight vector
    # m_ref:   (Bt, L)     mask block
    # rep_ref: (Bt, H)     pooled representation output block
    # attn_ref:(Bt, L)     normalized attention output block
    # attn_sc: (Bt, L) f32 scratch (lets the rep loop re-read attn via pl.ds)
    Bt, L, H = x_ref.shape

    # scores[b, l] = <x[b, l, :], w> — VPU/XLU lane reduction accumulated over
    # h_chunk-wide slices so the live f32 temporary is (Bt, L, h_chunk), not (Bt, L, H).
    n_h = H // h_chunk

    def score_step(i, acc):
        h0 = pl.multiple_of(i * h_chunk, h_chunk)
        xc = x_ref[:, :, pl.ds(h0, h_chunk)].astype(jnp.float32)   # (Bt, L, Hc)
        wc = w_ref[:, pl.ds(h0, h_chunk)].astype(jnp.float32)      # (1, Hc)
        return acc + jnp.sum(xc * wc[None, :, :], axis=-1)

    scores = lax.fori_loop(0, n_h, score_step,
                           jnp.zeros((Bt, L), jnp.float32),
                           unroll=(n_h <= 8))

    # relu -> numerically stable exp. The softmax denominator cancels against the
    # mask renormalization, so only one reduction + one divide remain.
    mask = m_ref[...].astype(jnp.float32)
    s = jnp.maximum(scores, 0.0)
    s_max = jnp.max(s, axis=-1, keepdims=True)                      # (Bt, 1)
    e = jnp.exp(s - s_max)                                          # (Bt, L)
    masked = e * mask                                               # (Bt, L)
    denom = jnp.sum(masked, axis=-1, keepdims=True)                 # (Bt, 1)
    # Exact divide (not pl.reciprocal(approx=True)) to stay within 1e-5 of the
    # reference. Fully-masked rows produce 0/0 = NaN by design (PyTorch parity);
    # padded tail rows of the last grid step also hit this but their writeback is
    # clipped by Pallas, so results stay correct.
    attn = masked / denom                                           # (Bt, L) f32

    attn_sc[...] = attn
    attn_ref[...] = attn.astype(attn_ref.dtype)

    # rep[b, :] = sum_l attn[b, l] * x[b, l, :] — accumulated over l_chunk-row
    # slices so the live f32 temporary is (Bt, l_chunk, H), not (Bt, L, H).
    n_l = L // l_chunk

    def rep_step(i, acc):
        l0 = pl.multiple_of(i * l_chunk, l_chunk)
        xc = x_ref[:, pl.ds(l0, l_chunk), :].astype(jnp.float32)    # (Bt, Lc, H)
        ac = attn_sc[:, pl.ds(l0, l_chunk)]                          # (Bt, Lc) f32
        return acc + jnp.sum(ac[:, :, None] * xc, axis=1)

    rep = lax.fori_loop(0, n_l, rep_step,
                        jnp.zeros((Bt, H), jnp.float32),
                        unroll=(n_l <= 8))

    rep_ref[...] = rep.astype(rep_ref.dtype)


def _round_up(x, m):
    return ((x + m - 1) // m) * m


def _default_vmem_limit_bytes():
    """Scoped VMEM budget derived from the chip generation (safe fallback)."""
    try:
        cap = int(pltpu.get_tpu_info().vmem_capacity_bytes)
    except Exception:
        cap = 64 * 1024 * 1024  # conservative (v7x per-TC capacity)
    if cap >= 128 * 1024 * 1024:
        # v5e / v6e: 128 MiB physical and nothing else competing in this op.
        return 96 * 1024 * 1024
    # v7x: 64 MiB physical per TensorCore -> stay at a 32 MiB scoped ceiling.
    return min(cap // 2, 32 * 1024 * 1024)


def attention_forward(inputs, text_masks, att_weights, *, block_b=None):
    """inputs: (B, L, H), text_masks: (B, L), att_weights: (1, H)."""
    B, L0, H0 = inputs.shape
    out_dtype = inputs.dtype

    # Lane-pad L and H to multiples of 128: lane-dense output blocks / full-width
    # writeback DMAs. Padded L positions carry mask 0, padded H columns carry zero
    # weights and zero inputs, so they contribute nothing to the math.
    L = _round_up(L0, 128)
    H = _round_up(H0, 128)
    if (L, H) != (L0, H0):
        inputs = jnp.pad(inputs, ((0, 0), (0, L - L0), (0, H - H0)))
        text_masks = jnp.pad(text_masks, ((0, 0), (0, L - L0)))
        att_weights = jnp.pad(att_weights, ((0, 0), (0, H - H0)))

    in_itemsize = inputs.dtype.itemsize
    out_itemsize = jnp.dtype(out_dtype).itemsize
    mask_itemsize = text_masks.dtype.itemsize

    h_chunk = min(H, 128)  # always divides the lane-padded H
    vmem_limit = _default_vmem_limit_bytes()
    budget = int(vmem_limit * 0.9)

    def vmem_estimate(bt, l_chunk, n_buf_in):
        """f32-aware working-set estimate (temporaries are f32 even for bf16 inputs)."""
        inp = n_buf_in * bt * L * H * in_itemsize                        # input block buffers
        other_io = 2 * (bt * L * mask_itemsize + H * in_itemsize
                        + bt * (H + L) * out_itemsize)                   # mask/weights/outputs
        scratch = 4 * bt * L                                             # f32 attn scratch
        temps = 4 * bt * (L * h_chunk + l_chunk * H + 8 * L)             # f32 chunk temps + vectors
        return inp + other_io + scratch + temps

    if block_b is None:
        per_row = max(1, vmem_estimate(1, 8, 2))
        bt_vmem = budget // per_row
        if bt_vmem < 8:
            # TODO(synk): for very large L*H even an 8-row block can exceed the scoped
            # VMEM budget (hits first on v7x's 64 MiB); add an inner pipeline over L
            # with a streaming masked softmax (running max / sum(e*mask) / sum(e*mask*x)).
            bt_vmem = 8
        row_bytes = max(1, L * H * in_itemsize)
        if B <= 8:
            block_b = B  # tiny batch: nothing to pipeline over
        else:
            bt = pl.cdiv(B, _MIN_GRID_STEPS)                      # >= ~8 grid steps
            bt = min(bt, max(8, _TARGET_BLOCK_BYTES // row_bytes))  # keep blocks <= ~8 MiB
            bt = min(bt, bt_vmem, B)
            block_b = B if bt >= B else max(8, (bt // 8) * 8)     # sublane-aligned tiles
    block_b = int(min(block_b, B))

    grid_b = pl.cdiv(B, block_b)

    # rep-accumulation chunk over L: largest power-of-two (8..128, all divide the
    # lane-padded L) whose (block_b, l_chunk, H) f32 temporary stays <= ~2 MiB.
    l_chunk = 8
    for cand in (128, 64, 32, 16, 8):
        if L % cand == 0 and 4 * block_b * cand * H <= (2 << 20):
            l_chunk = cand
            break

    # Deeper input buffering when there are enough grid steps to hide DMA issue
    # latency and the VMEM budget allows a third copy of the input block.
    x_spec_kwargs = {}
    if grid_b >= 4 and vmem_estimate(block_b, l_chunk, 3) <= budget:
        x_spec_kwargs["pipeline_mode"] = pl.Buffered(3)

    kernel = partial(_attention_kernel, h_chunk=h_chunk, l_chunk=l_chunk)

    rep, attn = pl.pallas_call(
        kernel,
        out_shape=(
            jax.ShapeDtypeStruct((B, H), out_dtype),
            jax.ShapeDtypeStruct((B, L), out_dtype),
        ),
        grid=(grid_b,),
        in_specs=[
            pl.BlockSpec((block_b, L, H), lambda b: (b, 0, 0), **x_spec_kwargs),
            pl.BlockSpec((1, H), lambda b: (0, 0)),               # shared weight vector
            pl.BlockSpec((block_b, L), lambda b: (b, 0)),         # mask rows
        ],
        out_specs=(
            pl.BlockSpec((block_b, H), lambda b: (b, 0)),         # representations
            pl.BlockSpec((block_b, L), lambda b: (b, 0)),         # attentions
        ),
        scratch_shapes=[pltpu.VMEM((block_b, L), jnp.float32)],   # f32 attn scratch
        compiler_params=pltpu.CompilerParams(
            dimension_semantics=("parallel",),
            vmem_limit_bytes=vmem_limit,
        ),
    )(inputs, att_weights, text_masks)

    # Slice away the lane padding. torch `.squeeze()` would drop the batch dim when
    # B == 1; we intentionally keep explicit (B, H) / (B, L) shapes.
    if (L, H) != (L0, H0):
        rep = rep[:, :H0]
        attn = attn[:, :L0]
    return rep, attn


def _reference(inputs, text_masks, att_weights):
    scores = jnp.einsum("blh,oh->bl", inputs, att_weights)
    attn = jax.nn.softmax(jnp.maximum(scores, 0.0), axis=-1)
    masked = attn * text_masks
    attn_n = masked / jnp.sum(masked, axis=-1, keepdims=True)
    rep = jnp.einsum("bl,blh->bh", attn_n, inputs)
    return rep, attn_n


def _run_case(key, B, L, H, name):
    k_in, k_w = jax.random.split(key)
    inputs = jax.random.normal(k_in, (B, L, H), dtype=jnp.float32)

    # deterministic init matching nn.init.uniform_(-stdv, stdv), stdv = 1/sqrt(H)
    stdv = 1.0 / np.sqrt(H)
    att_weights = jax.random.uniform(
        k_w, (1, H), minval=-stdv, maxval=stdv, dtype=jnp.float32
    )

    # deterministic prefix masks (every row keeps at least one valid position)
    lengths = (np.arange(B) % L) + 1
    mask_np = (np.arange(L)[None, :] < lengths[:, None]).astype(np.float32)
    text_masks = jnp.asarray(mask_np)

    rep, attn = attention_forward(inputs, text_masks, att_weights)
    jax.block_until_ready((rep, attn))

    rep_ref, attn_ref = _reference(inputs, text_masks, att_weights)
    assert np.allclose(np.asarray(rep), np.asarray(rep_ref), rtol=1e-5, atol=2e-5), name
    assert np.allclose(np.asarray(attn), np.asarray(attn_ref), rtol=1e-5, atol=2e-5), name


if __name__ == "__main__":
    key = jax.random.PRNGKey(0)
    k1, k2 = jax.random.split(key)

    # Small demo shape (single-block path, lane padding of L and H exercised).
    _run_case(k1, B=2, L=8, H=32, name="small")
    # Multi-step grid path: 9 grid steps of 8 rows, tail-clipped last block,
    # 3-deep input buffering, chunked reductions.
    _run_case(k2, B=68, L=56, H=96, name="tiled")

    print("KERNEL_OK")
</pallas_src>

<mosaic_0001>
module attributes {stable_mosaic.version = 11 : i64} {
  func.func @_attention_kernel(%arg0: i32, %arg1: memref<2x128x128xf32, #tpu.memory_space<vmem>>, %arg2: memref<1x128xf32, #tpu.memory_space<vmem>>, %arg3: memref<2x128xf32, #tpu.memory_space<vmem>>, %arg4: memref<2x128xf32, #tpu.memory_space<vmem>>, %arg5: memref<2x128xf32, #tpu.memory_space<vmem>>, %arg6: memref<2x128xf32, #tpu.memory_space<vmem>>) attributes {dimension_semantics = [#tpu.dimension_semantics<parallel>], iteration_bounds = array<i64: 1>, scalar_prefetch = 0 : i64, scratch_operands = 1 : i64, tpu.core_type = #tpu.core_type<tc>, window_params = [{transform_indices = @transform_0, window_bounds = array<i64: 2, 128, 128>}, {pipeline_mode = #tpu.pipeline_mode<synchronous>, transform_indices = @transform_1, window_bounds = array<i64: 1, 128>}, {transform_indices = @transform_2, window_bounds = array<i64: 2, 128>}, {transform_indices = @transform_3, window_bounds = array<i64: 2, 128>}, {transform_indices = @transform_4, window_bounds = array<i64: 2, 128>}]} {
    %cst = arith.constant 0.000000e+00 : f32
    %0 = vector.broadcast %cst : f32 to vector<2x128xf32>
    %c0_i32 = arith.constant 0 : i32
    %c128_i32 = arith.constant 128 : i32
    %1 = arith.muli %c0_i32, %c128_i32 : i32
    %2 = tpu.assume_multiple %1, 128 : i32
    %c0 = arith.constant 0 : index
    %c0_0 = arith.constant 0 : index
    %3 = arith.index_cast %2 : i32 to index
    %4 = vector.load %arg1[%c0, %c0_0, %3] : memref<2x128x128xf32, #tpu.memory_space<vmem>>, vector<2x128x128xf32>
    %c0_1 = arith.constant 0 : index
    %5 = arith.index_cast %2 : i32 to index
    %6 = vector.load %arg2[%c0_1, %5] : memref<1x128xf32, #tpu.memory_space<vmem>>, vector<1x128xf32>
    %7 = vector.shape_cast %6 : vector<1x128xf32> to vector<1x1x128xf32>
    %8 = vector.broadcast %7 : vector<1x1x128xf32> to vector<2x128x128xf32>
    %9 = arith.mulf %4, %8 : vector<2x128x128xf32>
    %cst_2 = arith.constant dense<0.000000e+00> : vector<2x128xf32>
    %10 = vector.multi_reduction <add>, %9, %cst_2 [2] : vector<2x128x128xf32> to vector<2x128xf32>
    %11 = arith.addf %0, %10 : vector<2x128xf32>
    %c1_i32 = arith.constant 1 : i32
    %c0_3 = arith.constant 0 : index
    %c0_4 = arith.constant 0 : index
    %12 = vector.load %arg3[%c0_3, %c0_4] : memref<2x128xf32, #tpu.memory_space<vmem>>, vector<2x128xf32>
    %cst_5 = arith.constant 0.000000e+00 : f32
    %13 = vector.broadcast %cst_5 : f32 to vector<2x128xf32>
    %14 = arith.maximumf %11, %13 : vector<2x128xf32>
    %cst_6 = arith.constant dense<0xFF800000> : vector<2xf32>
    %15 = vector.multi_reduction <maximumf>, %14, %cst_6 [1] : vector<2x128xf32> to vector<2xf32>
    %16 = vector.shape_cast %15 : vector<2xf32> to vector<2x1xf32>
    %17 = vector.broadcast %16 : vector<2x1xf32> to vector<2x128xf32>
    %18 = arith.subf %14, %17 : vector<2x128xf32>
    %19 = math.exp %18 : vector<2x128xf32>
    %20 = arith.mulf %19, %12 : vector<2x128xf32>
    %cst_7 = arith.constant dense<0.000000e+00> : vector<2xf32>
    %21 = vector.multi_reduction <add>, %20, %cst_7 [1] : vector<2x128xf32> to vector<2xf32>
    %22 = vector.shape_cast %21 : vector<2xf32> to vector<2x1xf32>
    %23 = vector.broadcast %22 : vector<2x1xf32> to vector<2x128xf32>
    %24 = arith.divf %20, %23 : vector<2x128xf32>
    %c0_8 = arith.constant 0 : index
    %c0_9 = arith.constant 0 : index
    %25 = vector.load %arg6[%c0_8, %c0_9] : memref<2x128xf32, #tpu.memory_space<vmem>>, vector<2x128xf32>
    tpu.vector_store %arg6[%c0_8, %c0_9], %24 {strides = array<i32>} : memref<2x128xf32, #tpu.memory_space<vmem>>, vector<2x128xf32>,
    %c0_10 = arith.constant 0 : index
    %c0_11 = arith.constant 0 : index
    %26 = vector.load %arg5[%c0_10, %c0_11] : memref<2x128xf32, #tpu.memory_space<vmem>>, vector<2x128xf32>
    tpu.vector_store %arg5[%c0_10, %c0_11], %24 {strides = array<i32>} : memref<2x128xf32, #tpu.memory_space<vmem>>, vector<2x128xf32>,
    %cst_12 = arith.constant 0.000000e+00 : f32
    %27 = vector.broadcast %cst_12 : f32 to vector<2x128xf32>
    %c0_i32_13 = arith.constant 0 : i32
    %c128_i32_14 = arith.constant 128 : i32
    %28 = arith.muli %c0_i32_13, %c128_i32_14 : i32
    %29 = tpu.assume_multiple %28, 128 : i32
    %c0_15 = arith.constant 0 : index
    %30 = arith.index_cast %29 : i32 to index
    %c0_16 = arith.constant 0 : index
    %31 = vector.load %arg1[%c0_15, %30, %c0_16] : memref<2x128x128xf32, #tpu.memory_space<vmem>>, vector<2x128x128xf32>
    %c0_17 = arith.constant 0 : index
    %32 = arith.index_cast %29 : i32 to index
    %33 = vector.load %arg6[%c0_17, %32] : memref<2x128xf32, #tpu.memory_space<vmem>>, vector<2x128xf32>
    %34 = vector.shape_cast %33 : vector<2x128xf32> to vector<2x128x1xf32>
    %35 = vector.broadcast %34 : vector<2x128x1xf32> to vector<2x128x128xf32>
    %36 = arith.mulf %35, %31 : vector<2x128x128xf32>
    %cst_18 = arith.constant dense<0.000000e+00> : vector<2x128xf32>
    %37 = vector.multi_reduction <add>, %36, %cst_18 [1] : vector<2x128x128xf32> to vector<2x128xf32>
    %38 = arith.addf %27, %37 : vector<2x128xf32>
    %c1_i32_19 = arith.constant 1 : i32
    %c0_20 = arith.constant 0 : index
    %c0_21 = arith.constant 0 : index
    %39 = vector.load %arg4[%c0_20, %c0_21] : memref<2x128xf32, #tpu.memory_space<vmem>>, vector<2x128xf32>
    tpu.vector_store %arg4[%c0_20, %c0_21], %38 {strides = array<i32>} : memref<2x128xf32, #tpu.memory_space<vmem>>, vector<2x128xf32>,
    return
  }
  func.func @transform_0(%arg0: i32) -> (i32, i32, i32) {
    %c0_i32 = arith.constant 0 : i32
    %c0_i32_0 = arith.constant 0 : i32
    %c0_i32_1 = arith.constant 0 : i32
    return %arg0, %c0_i32, %c0_i32_0 : i32, i32, i32
  }
  func.func @transform_1(%arg0: i32) -> (i32, i32) {
    %c0_i32 = arith.constant 0 : i32
    %c0_i32_0 = arith.constant 0 : i32
    %c0_i32_1 = arith.constant 0 : i32
    return %c0_i32, %c0_i32_0 : i32, i32
  }
  func.func @transform_2(%arg0: i32) -> (i32, i32) {
    %c0_i32 = arith.constant 0 : i32
    %c0_i32_0 = arith.constant 0 : i32
    return %arg0, %c0_i32 : i32, i32
  }
  func.func @transform_3(%arg0: i32) -> (i32, i32) {
    %c0_i32 = arith.constant 0 : i32
    %c0_i32_0 = arith.constant 0 : i32
    return %arg0, %c0_i32 : i32, i32
  }
  func.func @transform_4(%arg0: i32) -> (i32, i32) {
    %c0_i32 = arith.constant 0 : i32
    %c0_i32_0 = arith.constant 0 : i32
    return %arg0, %c0_i32 : i32, i32
  }
}

</mosaic_0001>

<llo_original>
// kernel: tpu_custom_call.1
$region0: #{tpu_custom_call.1}
  #allocation0 [shape = 'u32[]', space=smem, size = 0x4, offset = 0x4, fixed_abs, tag = 'smem constant byte address 0x4 - core index']
  #allocation1 [shape = 'u32[144,128]{1,0:T(1,128)}', space=vmem, size = 0x12000, scoped, tag = 'internal scratch']
  #allocation2 [shape = 'f32[2,128]{1,0:T(2,128)}', space=vmem, size = 0x400, scoped, tag = 'scratch operand']
  %s0 = inlined_call_operand.hbm [shape: f32[2,128,128], index: 0, kind: input, shape index: {}]
  %s1 = inlined_call_operand.vmem [shape: f32[1,128], index: 1, kind: input, shape index: {}]
  %s2 = inlined_call_operand.vmem [shape: f32[2,128], index: 2, kind: input, shape index: {}]
  %s3 = inlined_call_operand.hbm [shape: f32[2,128], index: 3, kind: output, shape index: {0}]
  %s4 = inlined_call_operand.hbm [shape: f32[2,128], index: 4, kind: output, shape index: {1}]
  %5 = xla_tuple %s3, %s4
  %s6 = sld [smem:[#allocation0]]
  $region34: #{tpu_custom_call.1} parent=0
    _
  %s8 = ssub.s32 1, %s6
  %s9 = scalar_select 0, %s8, %s6
  $region1: #{tpu_custom_call.1} parent=0
    #allocation3 [shape = 'u8[131072]{0}', space=vmem, size = 0x20000, scoped, tag = 'input window, operand 0, single buffered']
    #allocation4 [shape = 's32[1]{0}', space=sflag, size = 0x4, scoped, tag = 'scoped memory for tpu_custom_call.1']
    #allocation5 [shape = 's32[1]{0}', space=sflag, size = 0x4, scoped, tag = 'scoped memory for tpu_custom_call.1']
    #allocation6 [shape = 'u8[1024]{0}', space=vmem, size = 0x400, scoped, tag = 'output window, operand 0, single buffered']
    #allocation7 [shape = 'u8[1024]{0}', space=vmem, size = 0x400, scoped, tag = 'output window, operand 1, single buffered']
    #allocation8 [shape = 's32[1]{0}', space=sflag, size = 0x4, scoped, tag = 'scoped memory for tpu_custom_call.1']
    %10 = vsyncpa [#allocation4], 0
    %11 = vsyncpa [#allocation5], 0
    %12 = vsyncpa [#allocation8], 0
    // Predicated region
    $region2: #{tpu_custom_call.1} parent=1 // pred_check
      _
    $region3: #{tpu_custom_call.1} parent=1 // pred_check_branch
      %14 = sbr.rel (0) target = $region5
    $region4: #{tpu_custom_call.1} parent=1 // pred_region
      %s16 = ssub.s32 4096, 4096
      %17 = vsyncadd [#allocation4], %s16
      %s18 = sshll.u32 [#allocation3], 4
      %s19 = int_to_ptr.vmem [resolvable:$true] %s18
      %24 = dma.hbm_to_vmem [thread:$0]  %s0, 4096, %s19, [#allocation4], 128, 128, 8
    $region5: #{tpu_custom_call.1} parent=1 // pred_fallthru
      _
    // Predicated region
    $region6: #{tpu_custom_call.1} parent=1 // pred_check
      _
    $region7: #{tpu_custom_call.1} parent=1 // pred_check_branch
      %26 = sbr.rel (0) target = $region9
    $region8: #{tpu_custom_call.1} parent=1 // pred_region
      _
    $region9: #{tpu_custom_call.1} parent=1 // pred_fallthru
      _
    // Predicated region
    $region10: #{tpu_custom_call.1} parent=1 // pred_check
      _
    $region11: #{tpu_custom_call.1} parent=1 // pred_check_branch
      %28 = sbr.rel (0) target = $region13
    $region12: #{tpu_custom_call.1} parent=1 // pred_region
      _
    $region13: #{tpu_custom_call.1} parent=1 // pred_fallthru
      _
    // Predicated region
    $region14: #{tpu_custom_call.1} parent=1 // pred_check
      _
    $region15: #{tpu_custom_call.1} parent=1 // pred_check_branch
      %30 = sbr.rel (0) target = $region17
    $region16: #{tpu_custom_call.1} parent=1 // pred_region
      %31 = dma.done [#allocation4], 4096
    $region17: #{tpu_custom_call.1} parent=1 // pred_fallthru
      _
    %v32 = vld [vmem:[#allocation3] sm:$0xff]
    %v33 = vld [vmem:[#allocation3 + $0x8] sm:$0xff]
    %v34 = vld [vmem:[#allocation3 + $0x10] sm:$0xff]
    %v35 = vld [vmem:[#allocation3 + $0x18] sm:$0xff]
    %v36 = vld [vmem:[#allocation3 + $0x20] sm:$0xff]
    %v37 = vld [vmem:[#allocation3 + $0x28] sm:$0xff]
    %v38 = vld [vmem:[#allocation3 + $0x30] sm:$0xff]
    %v39 = vld [vmem:[#allocation3 + $0x38] sm:$0xff]
    %v40 = vld [vmem:[#allocation3 + $0x40] sm:$0xff]
    %v41 = vld [vmem:[#allocation3 + $0x48] sm:$0xff]
    %v42 = vld [vmem:[#allocation3 + $0x50] sm:$0xff]
    %v43 = vld [vmem:[#allocation3 + $0x58] sm:$0xff]
    %v44 = vld [vmem:[#allocation3 + $0x60] sm:$0xff]
    %v45 = vld [vmem:[#allocation3 + $0x68] sm:$0xff]
    %v46 = vld [vmem:[#allocation3 + $0x70] sm:$0xff]
    %v47 = vld [vmem:[#allocation3 + $0x78] sm:$0xff]
    %v48 = vld [vmem:[#allocation3 + $0x80] sm:$0xff]
    %v49 = vld [vmem:[#allocation3 + $0x88] sm:$0xff]
    %v50 = vld [vmem:[#allocation3 + $0x90] sm:$0xff]
    %v51 = vld [vmem:[#allocation3 + $0x98] sm:$0xff]
    %v52 = vld [vmem:[#allocation3 + $0xa0] sm:$0xff]
    %v53 = vld [vmem:[#allocation3 + $0xa8] sm:$0xff]
    %v54 = vld [vmem:[#allocation3 + $0xb0] sm:$0xff]
    %v55 = vld [vmem:[#allocation3 + $0xb8] sm:$0xff]
    %v56 = vld [vmem:[#allocation3 + $0xc0] sm:$0xff]
    %v57 = vld [vmem:[#allocation3 + $0xc8] sm:$0xff]
    %v58 = vld [vmem:[#allocation3 + $0xd0] sm:$0xff]
    %v59 = vld [vmem:[#allocation3 + $0xd8] sm:$0xff]
    %v60 = vld [vmem:[#allocation3 + $0xe0] sm:$0xff]
    %v61 = vld [vmem:[#allocation3 + $0xe8] sm:$0xff]
    %v62 = vld [vmem:[#allocation3 + $0xf0] sm:$0xff]
    %v63 = vld [vmem:[#allocation3 + $0xf8] sm:$0xff]
    %v64 = vld [vmem:[%s1] sm:$0x1]
    %v66 = vlaneseq
    %v67 = vshrl.u32 %v66, 7
    %v68 = vsub.s32 0, %v67
    %v69 = vrot.slane %v64, %v68
    %v71 = vmul.f32 %v32, %v69
    %v72 = vmul.f32 %v33, %v69
    %v73 = vmul.f32 %v34, %v69
    %v74 = vmul.f32 %v35, %v69
    %v75 = vmul.f32 %v36, %v69
    %v76 = vmul.f32 %v37, %v69
    %v77 = vmul.f32 %v38, %v69
    %v78 = vmul.f32 %v39, %v69
    %v79 = vmul.f32 %v40, %v69
    %v80 = vmul.f32 %v41, %v69
    %v81 = vmul.f32 %v42, %v69
    %v82 = vmul.f32 %v43, %v69
    %v83 = vmul.f32 %v44, %v69
    %v84 = vmul.f32 %v45, %v69
    %v85 = vmul.f32 %v46, %v69
    %v86 = vmul.f32 %v47, %v69
    %v87 = vmul.f32 %v48, %v69
    %v88 = vmul.f32 %v49, %v69
    %v89 = vmul.f32 %v50, %v69
    %v90 = vmul.f32 %v51, %v69
    %v91 = vmul.f32 %v52, %v69
    %v92 = vmul.f32 %v53, %v69
    %v93 = vmul.f32 %v54, %v69
    %v94 = vmul.f32 %v55, %v69
    %v95 = vmul.f32 %v56, %v69
    %v96 = vmul.f32 %v57, %v69
    %v97 = vmul.f32 %v58, %v69
    %v98 = vmul.f32 %v59, %v69
    %v99 = vmul.f32 %v60, %v69
    %v100 = vmul.f32 %v61, %v69
    %v101 = vmul.f32 %v62, %v69
    %v102 = vmul.f32 %v63, %v69
    %103 = vadd.xlane.f32.xlu0 %v71
    %v104 = vpop.xlane.xlu0 %103
    %105 = vadd.xlane.f32.xlu0 %v72
    %v106 = vpop.xlane.xlu0 %105
    %107 = vadd.xlane.f32.xlu0 %v73
    %v108 = vpop.xlane.xlu0 %107
    %109 = vadd.xlane.f32.xlu0 %v74
    %v110 = vpop.xlane.xlu0 %109
    %111 = vadd.xlane.f32.xlu0 %v75
    %v112 = vpop.xlane.xlu0 %111
    %113 = vadd.xlane.f32.xlu0 %v76
    %v114 = vpop.xlane.xlu0 %113
    %115 = vadd.xlane.f32.xlu0 %v77
    %v116 = vpop.xlane.xlu0 %115
    %117 = vadd.xlane.f32.xlu0 %v78
    %v118 = vpop.xlane.xlu0 %117
    %119 = vadd.xlane.f32.xlu0 %v79
    %v120 = vpop.xlane.xlu0 %119
    %121 = vadd.xlane.f32.xlu0 %v80
    %v122 = vpop.xlane.xlu0 %121
    %123 = vadd.xlane.f32.xlu0 %v81
    %v124 = vpop.xlane.xlu0 %123
    %125 = vadd.xlane.f32.xlu0 %v82
    %v126 = vpop.xlane.xlu0 %125
    %127 = vadd.xlane.f32.xlu0 %v83
    %v128 = vpop.xlane.xlu0 %127
    %129 = vadd.xlane.f32.xlu0 %v84
    %v130 = vpop.xlane.xlu0 %129
    %131 = vadd.xlane.f32.xlu0 %v85
    %v132 = vpop.xlane.xlu0 %131
    %133 = vadd.xlane.f32.xlu0 %v86
    %v134 = vpop.xlane.xlu0 %133
    %135 = vadd.xlane.f32.xlu0 %v87
    %v136 = vpop.xlane.xlu0 %135
    %137 = vadd.xlane.f32.xlu0 %v88
    %v138 = vpop.xlane.xlu0 %137
    %139 = vadd.xlane.f32.xlu0 %v89
    %v140 = vpop.xlane.xlu0 %139
    %141 = vadd.xlane.f32.xlu0 %v90
    %v142 = vpop.xlane.xlu0 %141
    %143 = vadd.xlane.f32.xlu0 %v91
    %v144 = vpop.xlane.xlu0 %143
    %145 = vadd.xlane.f32.xlu0 %v92
    %v146 = vpop.xlane.xlu0 %145
    %147 = vadd.xlane.f32.xlu0 %v93
    %v148 = vpop.xlane.xlu0 %147
    %149 = vadd.xlane.f32.xlu0 %v94
    %v150 = vpop.xlane.xlu0 %149
    %151 = vadd.xlane.f32.xlu0 %v95
    %v152 = vpop.xlane.xlu0 %151
    %153 = vadd.xlane.f32.xlu0 %v96
    %v154 = vpop.xlane.xlu0 %153
    %155 = vadd.xlane.f32.xlu0 %v97
    %v156 = vpop.xlane.xlu0 %155
    %157 = vadd.xlane.f32.xlu0 %v98
    %v158 = vpop.xlane.xlu0 %157
    %159 = vadd.xlane.f32.xlu0 %v99
    %v160 = vpop.xlane.xlu0 %159
    %161 = vadd.xlane.f32.xlu0 %v100
    %v162 = vpop.xlane.xlu0 %161
    %163 = vadd.xlane.f32.xlu0 %v101
    %v164 = vpop.xlane.xlu0 %163
    %165 = vadd.xlane.f32.xlu0 %v102
    %v166 = vpop.xlane.xlu0 %165
    %v167 = vadd.f32 %v104, 0.0
    %v168 = vadd.f32 %v106, 0.0
    %v169 = vadd.f32 %v108, 0.0
    %v170 = vadd.f32 %v110, 0.0
    %v171 = vadd.f32 %v112, 0.0
    %v172 = vadd.f32 %v114, 0.0
    %v173 = vadd.f32 %v116, 0.0
    %v174 = vadd.f32 %v118, 0.0
    %v175 = vadd.f32 %v120, 0.0
    %v176 = vadd.f32 %v122, 0.0
    %v177 = vadd.f32 %v124, 0.0
    %v178 = vadd.f32 %v126, 0.0
    %v179 = vadd.f32 %v128, 0.0
    %v180 = vadd.f32 %v130, 0.0
    %v181 = vadd.f32 %v132, 0.0
    %v182 = vadd.f32 %v134, 0.0
    %v183 = vadd.f32 %v136, 0.0
    %v184 = vadd.f32 %v138, 0.0
    %v185 = vadd.f32 %v140, 0.0
    %v186 = vadd.f32 %v142, 0.0
    %v187 = vadd.f32 %v144, 0.0
    %v188 = vadd.f32 %v146, 0.0
    %v189 = vadd.f32 %v148, 0.0
    %v190 = vadd.f32 %v150, 0.0
    %v191 = vadd.f32 %v152, 0.0
    %v192 = vadd.f32 %v154, 0.0
    %v193 = vadd.f32 %v156, 0.0
    %v194 = vadd.f32 %v158, 0.0
    %v195 = vadd.f32 %v160, 0.0
    %v196 = vadd.f32 %v162, 0.0
    %v197 = vadd.f32 %v164, 0.0
    %v198 = vadd.f32 %v166, 0.0
    %v199 = vld [vmem:[%s2] sm:$0x3]
    %v200 = vmax.f32 %v167, 0.0
    %v201 = vmax.f32 %v168, 0.0
    %v202 = vmax.f32 %v169, 0.0
    %v203 = vmax.f32 %v170, 0.0
    %v204 = vmax.f32 %v171, 0.0
    %v205 = vmax.f32 %v172, 0.0
    %v206 = vmax.f32 %v173, 0.0
    %v207 = vmax.f32 %v174, 0.0
    %v208 = vmax.f32 %v175, 0.0
    %v209 = vmax.f32 %v176, 0.0
    %v210 = vmax.f32 %v177, 0.0
    %v211 = vmax.f32 %v178, 0.0
    %v212 = vmax.f32 %v179, 0.0
    %v213 = vmax.f32 %v180, 0.0
    %v214 = vmax.f32 %v181, 0.0
    %v215 = vmax.f32 %v182, 0.0
    %v216 = vmax.f32 %v183, 0.0
    %v217 = vmax.f32 %v184, 0.0
    %v218 = vmax.f32 %v185, 0.0
    %v219 = vmax.f32 %v186, 0.0
    %v220 = vmax.f32 %v187, 0.0
    %v221 = vmax.f32 %v188, 0.0
    %v222 = vmax.f32 %v189, 0.0
    %v223 = vmax.f32 %v190, 0.0
    %v224 = vmax.f32 %v191, 0.0
    %v225 = vmax.f32 %v192, 0.0
    %v226 = vmax.f32 %v193, 0.0
    %v227 = vmax.f32 %v194, 0.0
    %v228 = vmax.f32 %v195, 0.0
    %v229 = vmax.f32 %v196, 0.0
    %v230 = vmax.f32 %v197, 0.0
    %v231 = vmax.f32 %v198, 0.0
    %v264 = vlaneseq
    %v265 = vand.u32 %v264, 127
    %v266 = vlaneseq
    %v267 = vshrl.u32 %v266, 7
    %v268 = vsub.s32 %v265, %v267
    %v269 = vrot.slane %v200, %v268
    %v270 = vadd.s32 %v265, 4294967288
    %v271 = vlaneseq
    %v272 = vshrl.u32 %v271, 7
    %v273 = vsub.s32 %v270, %v272
    %v274 = vrot.slane %v201, %v273
    %vm275 = vcmask 130112
    %v276 = vsel %vm275, %v274, %v269
    %v277 = vadd.s32 %v265, 4294967280
    %v278 = vlaneseq
    %v279 = vshrl.u32 %v278, 7
    %v280 = vsub.s32 %v277, %v279
    %v281 = vrot.slane %v202, %v280
    %vm282 = vcmask 195712
    %v283 = vsel %vm282, %v281, %v276
    %v284 = vadd.s32 %v265, 4294967272
    %v285 = vlaneseq
    %v286 = vshrl.u32 %v285, 7
    %v287 = vsub.s32 %v284, %v286
    %v288 = vrot.slane %v203, %v287
    %vm289 = vcmask 261312
    %v290 = vsel %vm289, %v288, %v283
    %v291 = vadd.s32 %v265, 4294967264
    %v292 = vlaneseq
    %v293 = vshrl.u32 %v292, 7
    %v294 = vsub.s32 %v291, %v293
    %v295 = vrot.slane %v204, %v294
    %vm296 = vcmask 326912
    %v297 = vsel %vm296, %v295, %v290
    %v298 = vadd.s32 %v265, 4294967256
    %v299 = vlaneseq
    %v300 = vshrl.u32 %v299, 7
    %v301 = vsub.s32 %v298, %v300
    %v302 = vrot.slane %v205, %v301
    %vm303 = vcmask 392512
    %v304 = vsel %vm303, %v302, %v297
    %v305 = vadd.s32 %v265, 4294967248
    %v306 = vlaneseq
    %v307 = vshrl.u32 %v306, 7
    %v308 = vsub.s32 %v305, %v307
    %v309 = vrot.slane %v206, %v308
    %vm310 = vcmask 458112
    %v311 = vsel %vm310, %v309, %v304
    %v312 = vadd.s32 %v265, 4294967240
    %v313 = vlaneseq
    %v314 = vshrl.u32 %v313, 7
    %v315 = vsub.s32 %v312, %v314
    %v316 = vrot.slane %v207, %v315
    %vm317 = vcmask 523712
    %v318 = vsel %vm317, %v316, %v311
    %v319 = vadd.s32 %v265, 4294967232
    %v320 = vlaneseq
    %v321 = vshrl.u32 %v320, 7
    %v322 = vsub.s32 %v319, %v321
    %v323 = vrot.slane %v208, %v322
    %vm324 = vcmask 589312
    %v325 = vsel %vm324, %v323, %v318
    %v326 = vadd.s32 %v265, 4294967224
    %v327 = vlaneseq
    %v328 = vshrl.u32 %v327, 7
    %v329 = vsub.s32 %v326, %v328
    %v330 = vrot.slane %v209, %v329
    %vm331 = vcmask 654912
    %v332 = vsel %vm331, %v330, %v325
    %v333 = vadd.s32 %v265, 4294967216
    %v334 = vlaneseq
    %v335 = vshrl.u32 %v334, 7
    %v336 = vsub.s32 %v333, %v335
    %v337 = vrot.slane %v210, %v336
    %vm338 = vcmask 720512
    %v339 = vsel %vm338, %v337, %v332
    %v340 = vadd.s32 %v265, 4294967208
    %v341 = vlaneseq
    %v342 = vshrl.u32 %v341, 7
    %v343 = vsub.s32 %v340, %v342
    %v344 = vrot.slane %v211, %v343
    %vm345 = vcmask 786112
    %v346 = vsel %vm345, %v344, %v339
    %v347 = vadd.s32 %v265, 4294967200
    %v348 = vlaneseq
    %v349 = vshrl.u32 %v348, 7
    %v350 = vsub.s32 %v347, %v349
    %v351 = vrot.slane %v212, %v350
    %vm352 = vcmask 851712
    %v353 = vsel %vm352, %v351, %v346
    %v354 = vadd.s32 %v265, 4294967192
    %v355 = vlaneseq
    %v356 = vshrl.u32 %v355, 7
    %v357 = vsub.s32 %v354, %v356
    %v358 = vrot.slane %v213, %v357
    %vm359 = vcmask 917312
    %v360 = vsel %vm359, %v358, %v353
    %v361 = vadd.s32 %v265, 4294967184
    %v362 = vlaneseq
    %v363 = vshrl.u32 %v362, 7
    %v364 = vsub.s32 %v361, %v363
    %v365 = vrot.slane %v214, %v364
    %vm366 = vcmask 982912
    %v367 = vsel %vm366, %v365, %v360
    %v368 = vadd.s32 %v265, 4294967176
    %v369 = vlaneseq
    %v370 = vshrl.u32 %v369, 7
    %v371 = vsub.s32 %v368, %v370
    %v372 = vrot.slane %v215, %v371
    %vm373 = vcmask 1048512
    %v374 = vsel %vm373, %v372, %v367
    %v375 = vlaneseq
    %v376 = vshrl.u32 %v375, 7
    %v377 = vsub.s32 %v265, %v376
    %v378 = vrot.slane %v216, %v377
    %v379 = vlaneseq
    %v380 = vshrl.u32 %v379, 7
    %v381 = vsub.s32 %v270, %v380
    %v382 = vrot.slane %v217, %v381
    %v383 = vsel %vm275, %v382, %v378
    %v384 = vlaneseq
    %v385 = vshrl.u32 %v384, 7
    %v386 = vsub.s32 %v277, %v385
    %v387 = vrot.slane %v218, %v386
    %v388 = vsel %vm282, %v387, %v383
    %v389 = vlaneseq
    %v390 = vshrl.u32 %v389, 7
    %v391 = vsub.s32 %v284, %v390
    %v392 = vrot.slane %v219, %v391
    %v393 = vsel %vm289, %v392, %v388
    %v394 = vlaneseq
    %v395 = vshrl.u32 %v394, 7
    %v396 = vsub.s32 %v291, %v395
    %v397 = vrot.slane %v220, %v396
    %v398 = vsel %vm296, %v397, %v393
    %v399 = vlaneseq
    %v400 = vshrl.u32 %v399, 7
    %v401 = vsub.s32 %v298, %v400
    %v402 = vrot.slane %v221, %v401
    %v403 = vsel %vm303, %v402, %v398
    %v404 = vlaneseq
    %v405 = vshrl.u32 %v404, 7
    %v406 = vsub.s32 %v305, %v405
    %v407 = vrot.slane %v222, %v406
    %v408 = vsel %vm310, %v407, %v403
    %v409 = vlaneseq
    %v410 = vshrl.u32 %v409, 7
    %v411 = vsub.s32 %v312, %v410
    %v412 = vrot.slane %v223, %v411
    %v413 = vsel %vm317, %v412, %v408
    %v414 = vlaneseq
    %v415 = vshrl.u32 %v414, 7
    %v416 = vsub.s32 %v319, %v415
    %v417 = vrot.slane %v224, %v416
    %v418 = vsel %vm324, %v417, %v413
    %v419 = vlaneseq
    %v420 = vshrl.u32 %v419, 7
    %v421 = vsub.s32 %v326, %v420
    %v422 = vrot.slane %v225, %v421
    %v423 = vsel %vm331, %v422, %v418
    %v424 = vlaneseq
    %v425 = vshrl.u32 %v424, 7
    %v426 = vsub.s32 %v333, %v425
    %v427 = vrot.slane %v226, %v426
    %v428 = vsel %vm338, %v427, %v423
    %v429 = vlaneseq
    %v430 = vshrl.u32 %v429, 7
    %v431 = vsub.s32 %v340, %v430
    %v432 = vrot.slane %v227, %v431
    %v433 = vsel %vm345, %v432, %v428
    %v434 = vlaneseq
    %v435 = vshrl.u32 %v434, 7
    %v436 = vsub.s32 %v347, %v435
    %v437 = vrot.slane %v228, %v436
    %v438 = vsel %vm352, %v437, %v433
    %v439 = vlaneseq
    %v440 = vshrl.u32 %v439, 7
    %v441 = vsub.s32 %v354, %v440
    %v442 = vrot.slane %v229, %v441
    %v443 = vsel %vm359, %v442, %v438
    %v444 = vlaneseq
    %v445 = vshrl.u32 %v444, 7
    %v446 = vsub.s32 %v361, %v445
    %v447 = vrot.slane %v230, %v446
    %v448 = vsel %vm366, %v447, %v443
    %v449 = vlaneseq
    %v450 = vshrl.u32 %v449, 7
    %v451 = vsub.s32 %v368, %v450
    %v452 = vrot.slane %v231, %v451
    %v453 = vsel %vm373, %v452, %v448
    %vm454 = vcmask 1041409
    %v455 = vsel %vm454, %v453, %v374
    %vm457 = vcmask 1041408
    %v458 = vsel %vm457, %v455, -inf
    %459 = vmax.xlane.f32.xlu0 %v458
    %v460 = vpop.xlane.xlu0 %459
    %v462 = vlaneseq
    %v463 = vshrl.u32 %v462, 7
    %v464 = vsub.s32 0, %v463
    %v465 = vrot.slane %v460, %v464
    %v466 = vlaneseq
    %v467 = vshrl.u32 %v466, 7
    %v468 = vsub.s32 1, %v467
    %v469 = vrot.slane %v460, %v468
    %v472 = vsub.f32 %v200, %v465
    %v473 = vsub.f32 %v201, %v465
    %v474 = vsub.f32 %v202, %v465
    %v475 = vsub.f32 %v203, %v465
    %v476 = vsub.f32 %v204, %v465
    %v477 = vsub.f32 %v205, %v465
    %v478 = vsub.f32 %v206, %v465
    %v479 = vsub.f32 %v207, %v465
    %v480 = vsub.f32 %v208, %v465
    %v481 = vsub.f32 %v209, %v465
    %v482 = vsub.f32 %v210, %v465
    %v483 = vsub.f32 %v211, %v465
    %v484 = vsub.f32 %v212, %v465
    %v485 = vsub.f32 %v213, %v465
    %v486 = vsub.f32 %v214, %v465
    %v487 = vsub.f32 %v215, %v465
    %v488 = vsub.f32 %v216, %v469
    %v489 = vsub.f32 %v217, %v469
    %v490 = vsub.f32 %v218, %v469
    %v491 = vsub.f32 %v219, %v469
    %v492 = vsub.f32 %v220, %v469
    %v493 = vsub.f32 %v221, %v469
    %v494 = vsub.f32 %v222, %v469
    %v495 = vsub.f32 %v223, %v469
    %v496 = vsub.f32 %v224, %v469
    %v497 = vsub.f32 %v225, %v469
    %v498 = vsub.f32 %v226, %v469
    %v499 = vsub.f32 %v227, %v469
    %v500 = vsub.f32 %v228, %v469
    %v501 = vsub.f32 %v229, %v469
    %v502 = vsub.f32 %v230, %v469
    %v503 = vsub.f32 %v231, %v469
    %v504 = vmul.f32 %v472, 1.442695
    %v505 = vpow.pop %v504
    %v506 = vmul.f32 %v473, 1.442695
    %v507 = vpow.pop %v506
    %v508 = vmul.f32 %v474, 1.442695
    %v509 = vpow.pop %v508
    %v510 = vmul.f32 %v475, 1.442695
    %v511 = vpow.pop %v510
    %v512 = vmul.f32 %v476, 1.442695
    %v513 = vpow.pop %v512
    %v514 = vmul.f32 %v477, 1.442695
    %v515 = vpow.pop %v514
    %v516 = vmul.f32 %v478, 1.442695
    %v517 = vpow.pop %v516
    %v518 = vmul.f32 %v479, 1.442695
    %v519 = vpow.pop %v518
    %v520 = vmul.f32 %v480, 1.442695
    %v521 = vpow.pop %v520
    %v522 = vmul.f32 %v481, 1.442695
    %v523 = vpow.pop %v522
    %v524 = vmul.f32 %v482, 1.442695
    %v525 = vpow.pop %v524
    %v526 = vmul.f32 %v483, 1.442695
    %v527 = vpow.pop %v526
    %v528 = vmul.f32 %v484, 1.442695
    %v529 = vpow.pop %v528
    %v530 = vmul.f32 %v485, 1.442695
    %v531 = vpow.pop %v530
    %v532 = vmul.f32 %v486, 1.442695
    %v533 = vpow.pop %v532
    %v534 = vmul.f32 %v487, 1.442695
    %v535 = vpow.pop %v534
    %v536 = vmul.f32 %v488, 1.442695
    %v537 = vpow.pop %v536
    %v538 = vmul.f32 %v489, 1.442695
    %v539 = vpow.pop %v538
    %v540 = vmul.f32 %v490, 1.442695
    %v541 = vpow.pop %v540
    %v542 = vmul.f32 %v491, 1.442695
    %v543 = vpow.pop %v542
    %v544 = vmul.f32 %v492, 1.442695
    %v545 = vpow.pop %v544
    %v546 = vmul.f32 %v493, 1.442695
    %v547 = vpow.pop %v546
    %v548 = vmul.f32 %v494, 1.442695
    %v549 = vpow.pop %v548
    %v550 = vmul.f32 %v495, 1.442695
    %v551 = vpow.pop %v550
    %v552 = vmul.f32 %v496, 1.442695
    %v553 = vpow.pop %v552
    %v554 = vmul.f32 %v497, 1.442695
    %v555 = vpow.pop %v554
    %v556 = vmul.f32 %v498, 1.442695
    %v557 = vpow.pop %v556
    %v558 = vmul.f32 %v499, 1.442695
    %v559 = vpow.pop %v558
    %v560 = vmul.f32 %v500, 1.442695
    %v561 = vpow.pop %v560
    %v562 = vmul.f32 %v501, 1.442695
    %v563 = vpow.pop %v562
    %v564 = vmul.f32 %v502, 1.442695
    %v565 = vpow.pop %v564
    %v566 = vmul.f32 %v503, 1.442695
    %v567 = vpow.pop %v566
    %v569 = vlaneseq
    %v570 = vshrl.u32 %v569, 7
    %v571 = vsub.s32 0, %v570
    %v572 = vrot.slane %v199, %v571
    %574 = vbcast.lane.b32.xlu0 %v572, 256
    %v575 = vpop.permute.xlu0 %574
    %s577 = sor.u32 256, 8
    %578 = vbcast.lane.b32.xlu0 %v572, %s577
    %v579 = vpop.permute.xlu0 %578
    %s581 = sor.u32 256, 16
    %582 = vbcast.lane.b32.xlu0 %v572, %s581
    %v583 = vpop.permute.xlu0 %582
    %s585 = sor.u32 256, 24
    %586 = vbcast.lane.b32.xlu0 %v572, %s585
    %v587 = vpop.permute.xlu0 %586
    %s589 = sor.u32 256, 32
    %590 = vbcast.lane.b32.xlu0 %v572, %s589
    %v591 = vpop.permute.xlu0 %590
    %s593 = sor.u32 256, 40
    %594 = vbcast.lane.b32.xlu0 %v572, %s593
    %v595 = vpop.permute.xlu0 %594
    %s597 = sor.u32 256, 48
    %598 = vbcast.lane.b32.xlu0 %v572, %s597
    %v599 = vpop.permute.xlu0 %598
    %s601 = sor.u32 256, 56
    %602 = vbcast.lane.b32.xlu0 %v572, %s601
    %v603 = vpop.permute.xlu0 %602
    %s605 = sor.u32 256, 64
    %606 = vbcast.lane.b32.xlu0 %v572, %s605
    %v607 = vpop.permute.xlu0 %606
    %s609 = sor.u32 256, 72
    %610 = vbcast.lane.b32.xlu0 %v572, %s609
    %v611 = vpop.permute.xlu0 %610
    %s613 = sor.u32 256, 80
    %614 = vbcast.lane.b32.xlu0 %v572, %s613
    %v615 = vpop.permute.xlu0 %614
    %s617 = sor.u32 256, 88
    %618 = vbcast.lane.b32.xlu0 %v572, %s617
    %v619 = vpop.permute.xlu0 %618
    %s621 = sor.u32 256, 96
    %622 = vbcast.lane.b32.xlu0 %v572, %s621
    %v623 = vpop.permute.xlu0 %622
    %s625 = sor.u32 256, 104
    %626 = vbcast.lane.b32.xlu0 %v572, %s625
    %v627 = vpop.permute.xlu0 %626
    %s629 = sor.u32 256, 112
    %630 = vbcast.lane.b32.xlu0 %v572, %s629
    %v631 = vpop.permute.xlu0 %630
    %s633 = sor.u32 256, 120
    %634 = vbcast.lane.b32.xlu0 %v572, %s633
    %v635 = vpop.permute.xlu0 %634
    %v636 = vlaneseq
    %v637 = vshrl.u32 %v636, 7
    %v638 = vsub.s32 1, %v637
    %v639 = vrot.slane %v199, %v638
    %641 = vbcast.lane.b32.xlu0 %v639, 256
    %v642 = vpop.permute.xlu0 %641
    %s644 = sor.u32 256, 8
    %645 = vbcast.lane.b32.xlu0 %v639, %s644
    %v646 = vpop.permute.xlu0 %645
    %s648 = sor.u32 256, 16
    %649 = vbcast.lane.b32.xlu0 %v639, %s648
    %v650 = vpop.permute.xlu0 %649
    %s652 = sor.u32 256, 24
    %653 = vbcast.lane.b32.xlu0 %v639, %s652
    %v654 = vpop.permute.xlu0 %653
    %s656 = sor.u32 256, 32
    %657 = vbcast.lane.b32.xlu0 %v639, %s656
    %v658 = vpop.permute.xlu0 %657
    %s660 = sor.u32 256, 40
    %661 = vbcast.lane.b32.xlu0 %v639, %s660
    %v662 = vpop.permute.xlu0 %661
    %s664 = sor.u32 256, 48
    %665 = vbcast.lane.b32.xlu0 %v639, %s664
    %v666 = vpop.permute.xlu0 %665
    %s668 = sor.u32 256, 56
    %669 = vbcast.lane.b32.xlu0 %v639, %s668
    %v670 = vpop.permute.xlu0 %669
    %s672 = sor.u32 256, 64
    %673 = vbcast.lane.b32.xlu0 %v639, %s672
    %v674 = vpop.permute.xlu0 %673
    %s676 = sor.u32 256, 72
    %677 = vbcast.lane.b32.xlu0 %v639, %s676
    %v678 = vpop.permute.xlu0 %677
    %s680 = sor.u32 256, 80
    %681 = vbcast.lane.b32.xlu0 %v639, %s680
    %v682 = vpop.permute.xlu0 %681
    %s684 = sor.u32 256, 88
    %685 = vbcast.lane.b32.xlu0 %v639, %s684
    %v686 = vpop.permute.xlu0 %685
    %s688 = sor.u32 256, 96
    %689 = vbcast.lane.b32.xlu0 %v639, %s688
    %v690 = vpop.permute.xlu0 %689
    %s692 = sor.u32 256, 104
    %693 = vbcast.lane.b32.xlu0 %v639, %s692
    %v694 = vpop.permute.xlu0 %693
    %s696 = sor.u32 256, 112
    %697 = vbcast.lane.b32.xlu0 %v639, %s696
    %v698 = vpop.permute.xlu0 %697
    %s700 = sor.u32 256, 120
    %701 = vbcast.lane.b32.xlu0 %v639, %s700
    %v702 = vpop.permute.xlu0 %701
    %v735 = vmul.f32 %v505, %v575
    %v736 = vmul.f32 %v507, %v579
    %v737 = vmul.f32 %v509, %v583
    %v738 = vmul.f32 %v511, %v587
    %v739 = vmul.f32 %v513, %v591
    %v740 = vmul.f32 %v515, %v595
    %v741 = vmul.f32 %v517, %v599
    %v742 = vmul.f32 %v519, %v603
    %v743 = vmul.f32 %v521, %v607
    %v744 = vmul.f32 %v523, %v611
    %v745 = vmul.f32 %v525, %v615
    %v746 = vmul.f32 %v527, %v619
    %v747 = vmul.f32 %v529, %v623
    %v748 = vmul.f32 %v531, %v627
    %v749 = vmul.f32 %v533, %v631
    %v750 = vmul.f32 %v535, %v635
    %v751 = vmul.f32 %v537, %v642
    %v752 = vmul.f32 %v539, %v646
    %v753 = vmul.f32 %v541, %v650
    %v754 = vmul.f32 %v543, %v654
    %v755 = vmul.f32 %v545, %v658
    %v756 = vmul.f32 %v547, %v662
    %v757 = vmul.f32 %v549, %v666
    %v758 = vmul.f32 %v551, %v670
    %v759 = vmul.f32 %v553, %v674
    %v760 = vmul.f32 %v555, %v678
    %v761 = vmul.f32 %v557, %v682
    %v762 = vmul.f32 %v559, %v686
    %v763 = vmul.f32 %v561, %v690
    %v764 = vmul.f32 %v563, %v694
    %v765 = vmul.f32 %v565, %v698
    %v766 = vmul.f32 %v567, %v702
    %799 = vset.pattern.permute.xlu0 0
    %800 = vperm.xlu0 %799, %v735
    %v801 = vpop.permute.xlu0 %800
    %802 = vset.pattern.permute.xlu0 0
    %803 = vperm.xlu0 %802, %v736
    %v804 = vpop.permute.xlu0 %803
    %805 = vset.pattern.permute.xlu0 0
    %806 = vperm.xlu0 %805, %v737
    %v807 = vpop.permute.xlu0 %806
    %808 = vset.pattern.permute.xlu0 0
    %809 = vperm.xlu0 %808, %v738
    %v810 = vpop.permute.xlu0 %809
    %811 = vset.pattern.permute.xlu0 0
    %812 = vperm.xlu0 %811, %v739
    %v813 = vpop.permute.xlu0 %812
    %814 = vset.pattern.permute.xlu0 0
    %815 = vperm.xlu0 %814, %v740
    %v816 = vpop.permute.xlu0 %815
    %817 = vset.pattern.permute.xlu0 0
    %818 = vperm.xlu0 %817, %v741
    %v819 = vpop.permute.xlu0 %818
    %820 = vset.pattern.permute.xlu0 0
    %821 = vperm.xlu0 %820, %v742
    %v822 = vpop.permute.xlu0 %821
    %823 = vset.pattern.permute.xlu0 0
    %824 = vperm.xlu0 %823, %v743
    %v825 = vpop.permute.xlu0 %824
    %826 = vset.pattern.permute.xlu0 0
    %827 = vperm.xlu0 %826, %v744
    %v828 = vpop.permute.xlu0 %827
    %829 = vset.pattern.permute.xlu0 0
    %830 = vperm.xlu0 %829, %v745
    %v831 = vpop.permute.xlu0 %830
    %832 = vset.pattern.permute.xlu0 0
    %833 = vperm.xlu0 %832, %v746
    %v834 = vpop.permute.xlu0 %833
    %835 = vset.pattern.permute.xlu0 0
    %836 = vperm.xlu0 %835, %v747
    %v837 = vpop.permute.xlu0 %836
    %838 = vset.pattern.permute.xlu0 0
    %839 = vperm.xlu0 %838, %v748
    %v840 = vpop.permute.xlu0 %839
    %841 = vset.pattern.permute.xlu0 0
    %842 = vperm.xlu0 %841, %v749
    %v843 = vpop.permute.xlu0 %842
    %844 = vset.pattern.permute.xlu0 0
    %845 = vperm.xlu0 %844, %v750
    %v846 = vpop.permute.xlu0 %845
    %847 = vset.pattern.permute.xlu0 0
    %848 = vperm.xlu0 %847, %v751
    %v849 = vpop.permute.xlu0 %848
    %850 = vset.pattern.permute.xlu0 0
    %851 = vperm.xlu0 %850, %v752
    %v852 = vpop.permute.xlu0 %851
    %853 = vset.pattern.permute.xlu0 0
    %854 = vperm.xlu0 %853, %v753
    %v855 = vpop.permute.xlu0 %854
    %856 = vset.pattern.permute.xlu0 0
    %857 = vperm.xlu0 %856, %v754
    %v858 = vpop.permute.xlu0 %857
    %859 = vset.pattern.permute.xlu0 0
    %860 = vperm.xlu0 %859, %v755
    %v861 = vpop.permute.xlu0 %860
    %862 = vset.pattern.permute.xlu0 0
    %863 = vperm.xlu0 %862, %v756
    %v864 = vpop.permute.xlu0 %863
    %865 = vset.pattern.permute.xlu0 0
    %866 = vperm.xlu0 %865, %v757
    %v867 = vpop.permute.xlu0 %866
    %868 = vset.pattern.permute.xlu0 0
    %869 = vperm.xlu0 %868, %v758
    %v870 = vpop.permute.xlu0 %869
    %871 = vset.pattern.permute.xlu0 0
    %872 = vperm.xlu0 %871, %v759
    %v873 = vpop.permute.xlu0 %872
    %874 = vset.pattern.permute.xlu0 0
    %875 = vperm.xlu0 %874, %v760
    %v876 = vpop.permute.xlu0 %875
    %877 = vset.pattern.permute.xlu0 0
    %878 = vperm.xlu0 %877, %v761
    %v879 = vpop.permute.xlu0 %878
    %880 = vset.pattern.permute.xlu0 0
    %881 = vperm.xlu0 %880, %v762
    %v882 = vpop.permute.xlu0 %881
    %883 = vset.pattern.permute.xlu0 0
    %884 = vperm.xlu0 %883, %v763
    %v885 = vpop.permute.xlu0 %884
    %886 = vset.pattern.permute.xlu0 0
    %887 = vperm.xlu0 %886, %v764
    %v888 = vpop.permute.xlu0 %887
    %889 = vset.pattern.permute.xlu0 0
    %890 = vperm.xlu0 %889, %v765
    %v891 = vpop.permute.xlu0 %890
    %892 = vset.pattern.permute.xlu0 0
    %893 = vperm.xlu0 %892, %v766
    %v894 = vpop.permute.xlu0 %893
    %v895 = vlaneseq
    %v896 = vshrl.u32 %v895, 7
    %v897 = vsub.s32 %v265, %v896
    %v898 = vrot.slane %v801, %v897
    %v899 = vlaneseq
    %v900 = vshrl.u32 %v899, 7
    %v901 = vsub.s32 %v270, %v900
    %v902 = vrot.slane %v804, %v901
    %v903 = vsel %vm275, %v902, %v898
    %v904 = vlaneseq
    %v905 = vshrl.u32 %v904, 7
    %v906 = vsub.s32 %v277, %v905
    %v907 = vrot.slane %v807, %v906
    %v908 = vsel %vm282, %v907, %v903
    %v909 = vlaneseq
    %v910 = vshrl.u32 %v909, 7
    %v911 = vsub.s32 %v284, %v910
    %v912 = vrot.slane %v810, %v911
    %v913 = vsel %vm289, %v912, %v908
    %v914 = vlaneseq
    %v915 = vshrl.u32 %v914, 7
    %v916 = vsub.s32 %v291, %v915
    %v917 = vrot.slane %v813, %v916
    %v918 = vsel %vm296, %v917, %v913
    %v919 = vlaneseq
    %v920 = vshrl.u32 %v919, 7
    %v921 = vsub.s32 %v298, %v920
    %v922 = vrot.slane %v816, %v921
    %v923 = vsel %vm303, %v922, %v918
    %v924 = vlaneseq
    %v925 = vshrl.u32 %v924, 7
    %v926 = vsub.s32 %v305, %v925
    %v927 = vrot.slane %v819, %v926
    %v928 = vsel %vm310, %v927, %v923
    %v929 = vlaneseq
    %v930 = vshrl.u32 %v929, 7
    %v931 = vsub.s32 %v312, %v930
    %v932 = vrot.slane %v822, %v931
    %v933 = vsel %vm317, %v932, %v928
    %v934 = vlaneseq
    %v935 = vshrl.u32 %v934, 7
    %v936 = vsub.s32 %v319, %v935
    %v937 = vrot.slane %v825, %v936
    %v938 = vsel %vm324, %v937, %v933
    %v939 = vlaneseq
    %v940 = vshrl.u32 %v939, 7
    %v941 = vsub.s32 %v326, %v940
    %v942 = vrot.slane %v828, %v941
    %v943 = vsel %vm331, %v942, %v938
    %v944 = vlaneseq
    %v945 = vshrl.u32 %v944, 7
    %v946 = vsub.s32 %v333, %v945
    %v947 = vrot.slane %v831, %v946
    %v948 = vsel %vm338, %v947, %v943
    %v949 = vlaneseq
    %v950 = vshrl.u32 %v949, 7
    %v951 = vsub.s32 %v340, %v950
    %v952 = vrot.slane %v834, %v951
    %v953 = vsel %vm345, %v952, %v948
    %v954 = vlaneseq
    %v955 = vshrl.u32 %v954, 7
    %v956 = vsub.s32 %v347, %v955
    %v957 = vrot.slane %v837, %v956
    %v958 = vsel %vm352, %v957, %v953
    %v959 = vlaneseq
    %v960 = vshrl.u32 %v959, 7
    %v961 = vsub.s32 %v354, %v960
    %v962 = vrot.slane %v840, %v961
    %v963 = vsel %vm359, %v962, %v958
    %v964 = vlaneseq
    %v965 = vshrl.u32 %v964, 7
    %v966 = vsub.s32 %v361, %v965
    %v967 = vrot.slane %v843, %v966
    %v968 = vsel %vm366, %v967, %v963
    %v969 = vlaneseq
    %v970 = vshrl.u32 %v969, 7
    %v971 = vsub.s32 %v368, %v970
    %v972 = vrot.slane %v846, %v971
    %v973 = vsel %vm373, %v972, %v968
    %v974 = vlaneseq
    %v975 = vshrl.u32 %v974, 7
    %v976 = vsub.s32 %v265, %v975
    %v977 = vrot.slane %v849, %v976
    %v978 = vlaneseq
    %v979 = vshrl.u32 %v978, 7
    %v980 = vsub.s32 %v270, %v979
    %v981 = vrot.slane %v852, %v980
    %v982 = vsel %vm275, %v981, %v977
    %v983 = vlaneseq
    %v984 = vshrl.u32 %v983, 7
    %v985 = vsub.s32 %v277, %v984
    %v986 = vrot.slane %v855, %v985
    %v987 = vsel %vm282, %v986, %v982
    %v988 = vlaneseq
    %v989 = vshrl.u32 %v988, 7
    %v990 = vsub.s32 %v284, %v989
    %v991 = vrot.slane %v858, %v990
    %v992 = vsel %vm289, %v991, %v987
    %v993 = vlaneseq
    %v994 = vshrl.u32 %v993, 7
    %v995 = vsub.s32 %v291, %v994
    %v996 = vrot.slane %v861, %v995
    %v997 = vsel %vm296, %v996, %v992
    %v998 = vlaneseq
    %v999 = vshrl.u32 %v998, 7
    %v1000 = vsub.s32 %v298, %v999
    %v1001 = vrot.slane %v864, %v1000
    %v1002 = vsel %vm303, %v1001, %v997
    %v1003 = vlaneseq
    %v1004 = vshrl.u32 %v1003, 7
    %v1005 = vsub.s32 %v305, %v1004
    %v1006 = vrot.slane %v867, %v1005
    %v1007 = vsel %vm310, %v1006, %v1002
    %v1008 = vlaneseq
    %v1009 = vshrl.u32 %v1008, 7
    %v1010 = vsub.s32 %v312, %v1009
    %v1011 = vrot.slane %v870, %v1010
    %v1012 = vsel %vm317, %v1011, %v1007
    %v1013 = vlaneseq
    %v1014 = vshrl.u32 %v1013, 7
    %v1015 = vsub.s32 %v319, %v1014
    %v1016 = vrot.slane %v873, %v1015
    %v1017 = vsel %vm324, %v1016, %v1012
    %v1018 = vlaneseq
    %v1019 = vshrl.u32 %v1018, 7
    %v1020 = vsub.s32 %v326, %v1019
    %v1021 = vrot.slane %v876, %v1020
    %v1022 = vsel %vm331, %v1021, %v1017
    %v1023 = vlaneseq
    %v1024 = vshrl.u32 %v1023, 7
    %v1025 = vsub.s32 %v333, %v1024
    %v1026 = vrot.slane %v879, %v1025
    %v1027 = vsel %vm338, %v1026, %v1022
    %v1028 = vlaneseq
    %v1029 = vshrl.u32 %v1028, 7
    %v1030 = vsub.s32 %v340, %v1029
    %v1031 = vrot.slane %v882, %v1030
    %v1032 = vsel %vm345, %v1031, %v1027
    %v1033 = vlaneseq
    %v1034 = vshrl.u32 %v1033, 7
    %v1035 = vsub.s32 %v347, %v1034
    %v1036 = vrot.slane %v885, %v1035
    %v1037 = vsel %vm352, %v1036, %v1032
    %v1038 = vlaneseq
    %v1039 = vshrl.u32 %v1038, 7
    %v1040 = vsub.s32 %v354, %v1039
    %v1041 = vrot.slane %v888, %v1040
    %v1042 = vsel %vm359, %v1041, %v1037
    %v1043 = vlaneseq
    %v1044 = vshrl.u32 %v1043, 7
    %v1045 = vsub.s32 %v361, %v1044
    %v1046 = vrot.slane %v891, %v1045
    %v1047 = vsel %vm366, %v1046, %v1042
    %v1048 = vlaneseq
    %v1049 = vshrl.u32 %v1048, 7
    %v1050 = vsub.s32 %v368, %v1049
    %v1051 = vrot.slane %v894, %v1050
    %v1052 = vsel %vm373, %v1051, %v1047
    %v1053 = vsel %vm454, %v1052, %v973
    %v1055 = vsel %vm457, %v1053, 0.0
    %1056 = vadd.xlane.f32.xlu0 %v1055
    %v1057 = vpop.xlane.xlu0 %1056
    %v1059 = vlaneseq
    %v1060 = vshrl.u32 %v1059, 7
    %v1061 = vsub.s32 0, %v1060
    %v1062 = vrot.slane %v1057, %v1061
    %v1063 = vlaneseq
    %v1064 = vshrl.u32 %v1063, 7
    %v1065 = vsub.s32 1, %v1064
    %v1066 = vrot.slane %v1057, %v1065
    %v1069 = vrcp.pop %v1062
    %v1070 = vmul.f32 %v735, %v1069
    %v1071 = vmul.f32 %v736, %v1069
    %v1072 = vmul.f32 %v737, %v1069
    %v1073 = vmul.f32 %v738, %v1069
    %v1074 = vmul.f32 %v739, %v1069
    %v1075 = vmul.f32 %v740, %v1069
    %v1076 = vmul.f32 %v741, %v1069
    %v1077 = vmul.f32 %v742, %v1069
    %v1078 = vmul.f32 %v743, %v1069
    %v1079 = vmul.f32 %v744, %v1069
    %v1080 = vmul.f32 %v745, %v1069
    %v1081 = vmul.f32 %v746, %v1069
    %v1082 = vmul.f32 %v747, %v1069
    %v1083 = vmul.f32 %v748, %v1069
    %v1084 = vmul.f32 %v749, %v1069
    %v1085 = vmul.f32 %v750, %v1069
    %v1086 = vrcp.pop %v1066
    %v1087 = vmul.f32 %v751, %v1086
    %v1088 = vmul.f32 %v752, %v1086
    %v1089 = vmul.f32 %v753, %v1086
    %v1090 = vmul.f32 %v754, %v1086
    %v1091 = vmul.f32 %v755, %v1086
    %v1092 = vmul.f32 %v756, %v1086
    %v1093 = vmul.f32 %v757, %v1086
    %v1094 = vmul.f32 %v758, %v1086
    %v1095 = vmul.f32 %v759, %v1086
    %v1096 = vmul.f32 %v760, %v1086
    %v1097 = vmul.f32 %v761, %v1086
    %v1098 = vmul.f32 %v762, %v1086
    %v1099 = vmul.f32 %v763, %v1086
    %v1100 = vmul.f32 %v764, %v1086
    %v1101 = vmul.f32 %v765, %v1086
    %v1102 = vmul.f32 %v766, %v1086
    %1135 = vset.pattern.permute.xlu0 0
    %1136 = vperm.xlu0 %1135, %v1070
    %v1137 = vpop.permute.xlu0 %1136
    %1138 = vset.pattern.permute.xlu0 0
    %1139 = vperm.xlu0 %1138, %v1071
    %v1140 = vpop.permute.xlu0 %1139
    %1141 = vset.pattern.permute.xlu0 0
    %1142 = vperm.xlu0 %1141, %v1072
    %v1143 = vpop.permute.xlu0 %1142
    %1144 = vset.pattern.permute.xlu0 0
    %1145 = vperm.xlu0 %1144, %v1073
    %v1146 = vpop.permute.xlu0 %1145
    %1147 = vset.pattern.permute.xlu0 0
    %1148 = vperm.xlu0 %1147, %v1074
    %v1149 = vpop.permute.xlu0 %1148
    %1150 = vset.pattern.permute.xlu0 0
    %1151 = vperm.xlu0 %1150, %v1075
    %v1152 = vpop.permute.xlu0 %1151
    %1153 = vset.pattern.permute.xlu0 0
    %1154 = vperm.xlu0 %1153, %v1076
    %v1155 = vpop.permute.xlu0 %1154
    %1156 = vset.pattern.permute.xlu0 0
    %1157 = vperm.xlu0 %1156, %v1077
    %v1158 = vpop.permute.xlu0 %1157
    %1159 = vset.pattern.permute.xlu0 0
    %1160 = vperm.xlu0 %1159, %v1078
    %v1161 = vpop.permute.xlu0 %1160
    %1162 = vset.pattern.permute.xlu0 0
    %1163 = vperm.xlu0 %1162, %v1079
    %v1164 = vpop.permute.xlu0 %1163
    %1165 = vset.pattern.permute.xlu0 0
    %1166 = vperm.xlu0 %1165, %v1080
    %v1167 = vpop.permute.xlu0 %1166
    %1168 = vset.pattern.permute.xlu0 0
    %1169 = vperm.xlu0 %1168, %v1081
    %v1170 = vpop.permute.xlu0 %1169
    %1171 = vset.pattern.permute.xlu0 0
    %1172 = vperm.xlu0 %1171, %v1082
    %v1173 = vpop.permute.xlu0 %1172
    %1174 = vset.pattern.permute.xlu0 0
    %1175 = vperm.xlu0 %1174, %v1083
    %v1176 = vpop.permute.xlu0 %1175
    %1177 = vset.pattern.permute.xlu0 0
    %1178 = vperm.xlu0 %1177, %v1084
    %v1179 = vpop.permute.xlu0 %1178
    %1180 = vset.pattern.permute.xlu0 0
    %1181 = vperm.xlu0 %1180, %v1085
    %v1182 = vpop.permute.xlu0 %1181
    %1183 = vset.pattern.permute.xlu0 0
    %1184 = vperm.xlu0 %1183, %v1087
    %v1185 = vpop.permute.xlu0 %1184
    %1186 = vset.pattern.permute.xlu0 0
    %1187 = vperm.xlu0 %1186, %v1088
    %v1188 = vpop.permute.xlu0 %1187
    %1189 = vset.pattern.permute.xlu0 0
    %1190 = vperm.xlu0 %1189, %v1089
    %v1191 = vpop.permute.xlu0 %1190
    %1192 = vset.pattern.permute.xlu0 0
    %1193 = vperm.xlu0 %1192, %v1090
    %v1194 = vpop.permute.xlu0 %1193
    %1195 = vset.pattern.permute.xlu0 0
    %1196 = vperm.xlu0 %1195, %v1091
    %v1197 = vpop.permute.xlu0 %1196
    %1198 = vset.pattern.permute.xlu0 0
    %1199 = vperm.xlu0 %1198, %v1092
    %v1200 = vpop.permute.xlu0 %1199
    %1201 = vset.pattern.permute.xlu0 0
    %1202 = vperm.xlu0 %1201, %v1093
    %v1203 = vpop.permute.xlu0 %1202
    %1204 = vset.pattern.permute.xlu0 0
    %1205 = vperm.xlu0 %1204, %v1094
    %v1206 = vpop.permute.xlu0 %1205
    %1207 = vset.pattern.permute.xlu0 0
    %1208 = vperm.xlu0 %1207, %v1095
    %v1209 = vpop.permute.xlu0 %1208
    %1210 = vset.pattern.permute.xlu0 0
    %1211 = vperm.xlu0 %1210, %v1096
    %v1212 = vpop.permute.xlu0 %1211
    %1213 = vset.pattern.permute.xlu0 0
    %1214 = vperm.xlu0 %1213, %v1097
    %v1215 = vpop.permute.xlu0 %1214
    %1216 = vset.pattern.permute.xlu0 0
    %1217 = vperm.xlu0 %1216, %v1098
    %v1218 = vpop.permute.xlu0 %1217
    %1219 = vset.pattern.permute.xlu0 0
    %1220 = vperm.xlu0 %1219, %v1099
    %v1221 = vpop.permute.xlu0 %1220
    %1222 = vset.pattern.permute.xlu0 0
    %1223 = vperm.xlu0 %1222, %v1100
    %v1224 = vpop.permute.xlu0 %1223
    %1225 = vset.pattern.permute.xlu0 0
    %1226 = vperm.xlu0 %1225, %v1101
    %v1227 = vpop.permute.xlu0 %1226
    %1228 = vset.pattern.permute.xlu0 0
    %1229 = vperm.xlu0 %1228, %v1102
    %v1230 = vpop.permute.xlu0 %1229
    %v1231 = vlaneseq
    %v1232 = vshrl.u32 %v1231, 7
    %v1233 = vsub.s32 %v265, %v1232
    %v1234 = vrot.slane %v1137, %v1233
    %v1235 = vlaneseq
    %v1236 = vshrl.u32 %v1235, 7
    %v1237 = vsub.s32 %v270, %v1236
    %v1238 = vrot.slane %v1140, %v1237
    %v1239 = vsel %vm275, %v1238, %v1234
    %v1240 = vlaneseq
    %v1241 = vshrl.u32 %v1240, 7
    %v1242 = vsub.s32 %v277, %v1241
    %v1243 = vrot.slane %v1143, %v1242
    %v1244 = vsel %vm282, %v1243, %v1239
    %v1245 = vlaneseq
    %v1246 = vshrl.u32 %v1245, 7
    %v1247 = vsub.s32 %v284, %v1246
    %v1248 = vrot.slane %v1146, %v1247
    %v1249 = vsel %vm289, %v1248, %v1244
    %v1250 = vlaneseq
    %v1251 = vshrl.u32 %v1250, 7
    %v1252 = vsub.s32 %v291, %v1251
    %v1253 = vrot.slane %v1149, %v1252
    %v1254 = vsel %vm296, %v1253, %v1249
    %v1255 = vlaneseq
    %v1256 = vshrl.u32 %v1255, 7
    %v1257 = vsub.s32 %v298, %v1256
    %v1258 = vrot.slane %v1152, %v1257
    %v1259 = vsel %vm303, %v1258, %v1254
    %v1260 = vlaneseq
    %v1261 = vshrl.u32 %v1260, 7
    %v1262 = vsub.s32 %v305, %v1261
    %v1263 = vrot.slane %v1155, %v1262
    %v1264 = vsel %vm310, %v1263, %v1259
    %v1265 = vlaneseq
    %v1266 = vshrl.u32 %v1265, 7
    %v1267 = vsub.s32 %v312, %v1266
    %v1268 = vrot.slane %v1158, %v1267
    %v1269 = vsel %vm317, %v1268, %v1264
    %v1270 = vlaneseq
    %v1271 = vshrl.u32 %v1270, 7
    %v1272 = vsub.s32 %v319, %v1271
    %v1273 = vrot.slane %v1161, %v1272
    %v1274 = vsel %vm324, %v1273, %v1269
    %v1275 = vlaneseq
    %v1276 = vshrl.u32 %v1275, 7
    %v1277 = vsub.s32 %v326, %v1276
    %v1278 = vrot.slane %v1164, %v1277
    %v1279 = vsel %vm331, %v1278, %v1274
    %v1280 = vlaneseq
    %v1281 = vshrl.u32 %v1280, 7
    %v1282 = vsub.s32 %v333, %v1281
    %v1283 = vrot.slane %v1167, %v1282
    %v1284 = vsel %vm338, %v1283, %v1279
    %v1285 = vlaneseq
    %v1286 = vshrl.u32 %v1285, 7
    %v1287 = vsub.s32 %v340, %v1286
    %v1288 = vrot.slane %v1170, %v1287
    %v1289 = vsel %vm345, %v1288, %v1284
    %v1290 = vlaneseq
    %v1291 = vshrl.u32 %v1290, 7
    %v1292 = vsub.s32 %v347, %v1291
    %v1293 = vrot.slane %v1173, %v1292
    %v1294 = vsel %vm352, %v1293, %v1289
    %v1295 = vlaneseq
    %v1296 = vshrl.u32 %v1295, 7
    %v1297 = vsub.s32 %v354, %v1296
    %v1298 = vrot.slane %v1176, %v1297
    %v1299 = vsel %vm359, %v1298, %v1294
    %v1300 = vlaneseq
    %v1301 = vshrl.u32 %v1300, 7
    %v1302 = vsub.s32 %v361, %v1301
    %v1303 = vrot.slane %v1179, %v1302
    %v1304 = vsel %vm366, %v1303, %v1299
    %v1305 = vlaneseq
    %v1306 = vshrl.u32 %v1305, 7
    %v1307 = vsub.s32 %v368, %v1306
    %v1308 = vrot.slane %v1182, %v1307
    %v1309 = vsel %vm373, %v1308, %v1304
    %v1310 = vlaneseq
    %v1311 = vshrl.u32 %v1310, 7
    %v1312 = vsub.s32 %v265, %v1311
    %v1313 = vrot.slane %v1185, %v1312
    %v1314 = vlaneseq
    %v1315 = vshrl.u32 %v1314, 7
    %v1316 = vsub.s32 %v270, %v1315
    %v1317 = vrot.slane %v1188, %v1316
    %v1318 = vsel %vm275, %v1317, %v1313
    %v1319 = vlaneseq
    %v1320 = vshrl.u32 %v1319, 7
    %v1321 = vsub.s32 %v277, %v1320
    %v1322 = vrot.slane %v1191, %v1321
    %v1323 = vsel %vm282, %v1322, %v1318
    %v1324 = vlaneseq
    %v1325 = vshrl.u32 %v1324, 7
    %v1326 = vsub.s32 %v284, %v1325
    %v1327 = vrot.slane %v1194, %v1326
    %v1328 = vsel %vm289, %v1327, %v1323
    %v1329 = vlaneseq
    %v1330 = vshrl.u32 %v1329, 7
    %v1331 = vsub.s32 %v291, %v1330
    %v1332 = vrot.slane %v1197, %v1331
    %v1333 = vsel %vm296, %v1332, %v1328
    %v1334 = vlaneseq
    %v1335 = vshrl.u32 %v1334, 7
    %v1336 = vsub.s32 %v298, %v1335
    %v1337 = vrot.slane %v1200, %v1336
    %v1338 = vsel %vm303, %v1337, %v1333
    %v1339 = vlaneseq
    %v1340 = vshrl.u32 %v1339, 7
    %v1341 = vsub.s32 %v305, %v1340
    %v1342 = vrot.slane %v1203, %v1341
    %v1343 = vsel %vm310, %v1342, %v1338
    %v1344 = vlaneseq
    %v1345 = vshrl.u32 %v1344, 7
    %v1346 = vsub.s32 %v312, %v1345
    %v1347 = vrot.slane %v1206, %v1346
    %v1348 = vsel %vm317, %v1347, %v1343
    %v1349 = vlaneseq
    %v1350 = vshrl.u32 %v1349, 7
    %v1351 = vsub.s32 %v319, %v1350
    %v1352 = vrot.slane %v1209, %v1351
    %v1353 = vsel %vm324, %v1352, %v1348
    %v1354 = vlaneseq
    %v1355 = vshrl.u32 %v1354, 7
    %v1356 = vsub.s32 %v326, %v1355
    %v1357 = vrot.slane %v1212, %v1356
    %v1358 = vsel %vm331, %v1357, %v1353
    %v1359 = vlaneseq
    %v1360 = vshrl.u32 %v1359, 7
    %v1361 = vsub.s32 %v333, %v1360
    %v1362 = vrot.slane %v1215, %v1361
    %v1363 = vsel %vm338, %v1362, %v1358
    %v1364 = vlaneseq
    %v1365 = vshrl.u32 %v1364, 7
    %v1366 = vsub.s32 %v340, %v1365
    %v1367 = vrot.slane %v1218, %v1366
    %v1368 = vsel %vm345, %v1367, %v1363
    %v1369 = vlaneseq
    %v1370 = vshrl.u32 %v1369, 7
    %v1371 = vsub.s32 %v347, %v1370
    %v1372 = vrot.slane %v1221, %v1371
    %v1373 = vsel %vm352, %v1372, %v1368
    %v1374 = vlaneseq
    %v1375 = vshrl.u32 %v1374, 7
    %v1376 = vsub.s32 %v354, %v1375
    %v1377 = vrot.slane %v1224, %v1376
    %v1378 = vsel %vm359, %v1377, %v1373
    %v1379 = vlaneseq
    %v1380 = vshrl.u32 %v1379, 7
    %v1381 = vsub.s32 %v361, %v1380
    %v1382 = vrot.slane %v1227, %v1381
    %v1383 = vsel %vm366, %v1382, %v1378
    %v1384 = vlaneseq
    %v1385 = vshrl.u32 %v1384, 7
    %v1386 = vsub.s32 %v368, %v1385
    %v1387 = vrot.slane %v1230, %v1386
    %v1388 = vsel %vm373, %v1387, %v1383
    %v1389 = vsel %vm454, %v1388, %v1309
    %1391 = vst [vmem:[#allocation2] sm:$0x3] %v1389
    %1392 = vst [vmem:[#allocation7] sm:$0x3] %v1389
    %v1393 = vld [vmem:[#allocation3] sm:$0xff]
    %v1394 = vld [vmem:[#allocation3 + $0x8] sm:$0xff]
    %v1395 = vld [vmem:[#allocation3 + $0x10] sm:$0xff]
    %v1396 = vld [vmem:[#allocation3 + $0x18] sm:$0xff]
    %v1397 = vld [vmem:[#allocation3 + $0x20] sm:$0xff]
    %v1398 = vld [vmem:[#allocation3 + $0x28] sm:$0xff]
    %v1399 = vld [vmem:[#allocation3 + $0x30] sm:$0xff]
    %v1400 = vld [vmem:[#allocation3 + $0x38] sm:$0xff]
    %v1401 = vld [vmem:[#allocation3 + $0x40] sm:$0xff]
    %v1402 = vld [vmem:[#allocation3 + $0x48] sm:$0xff]
    %v1403 = vld [vmem:[#allocation3 + $0x50] sm:$0xff]
    %v1404 = vld [vmem:[#allocation3 + $0x58] sm:$0xff]
    %v1405 = vld [vmem:[#allocation3 + $0x60] sm:$0xff]
    %v1406 = vld [vmem:[#allocation3 + $0x68] sm:$0xff]
    %v1407 = vld [vmem:[#allocation3 + $0x70] sm:$0xff]
    %v1408 = vld [vmem:[#allocation3 + $0x78] sm:$0xff]
    %v1409 = vld [vmem:[#allocation3 + $0x80] sm:$0xff]
    %v1410 = vld [vmem:[#allocation3 + $0x88] sm:$0xff]
    %v1411 = vld [vmem:[#allocation3 + $0x90] sm:$0xff]
    %v1412 = vld [vmem:[#allocation3 + $0x98] sm:$0xff]
    %v1413 = vld [vmem:[#allocation3 + $0xa0] sm:$0xff]
    %v1414 = vld [vmem:[#allocation3 + $0xa8] sm:$0xff]
    %v1415 = vld [vmem:[#allocation3 + $0xb0] sm:$0xff]
    %v1416 = vld [vmem:[#allocation3 + $0xb8] sm:$0xff]
    %v1417 = vld [vmem:[#allocation3 + $0xc0] sm:$0xff]
    %v1418 = vld [vmem:[#allocation3 + $0xc8] sm:$0xff]
    %v1419 = vld [vmem:[#allocation3 + $0xd0] sm:$0xff]
    %v1420 = vld [vmem:[#allocation3 + $0xd8] sm:$0xff]
    %v1421 = vld [vmem:[#allocation3 + $0xe0] sm:$0xff]
    %v1422 = vld [vmem:[#allocation3 + $0xe8] sm:$0xff]
    %v1423 = vld [vmem:[#allocation3 + $0xf0] sm:$0xff]
    %v1424 = vld [vmem:[#allocation3 + $0xf8] sm:$0xff]
    %v1425 = vld [vmem:[#allocation2] sm:$0x3]
    %v1426 = vlaneseq
    %v1427 = vshrl.u32 %v1426, 7
    %v1428 = vsub.s32 0, %v1427
    %v1429 = vrot.slane %v1425, %v1428
    %1431 = vbcast.lane.b32.xlu0 %v1429, 256
    %v1432 = vpop.permute.xlu0 %1431
    %s1434 = sor.u32 256, 8
    %1435 = vbcast.lane.b32.xlu0 %v1429, %s1434
    %v1436 = vpop.permute.xlu0 %1435
    %s1438 = sor.u32 256, 16
    %1439 = vbcast.lane.b32.xlu0 %v1429, %s1438
    %v1440 = vpop.permute.xlu0 %1439
    %s1442 = sor.u32 256, 24
    %1443 = vbcast.lane.b32.xlu0 %v1429, %s1442
    %v1444 = vpop.permute.xlu0 %1443
    %s1446 = sor.u32 256, 32
    %1447 = vbcast.lane.b32.xlu0 %v1429, %s1446
    %v1448 = vpop.permute.xlu0 %1447
    %s1450 = sor.u32 256, 40
    %1451 = vbcast.lane.b32.xlu0 %v1429, %s1450
    %v1452 = vpop.permute.xlu0 %1451
    %s1454 = sor.u32 256, 48
    %1455 = vbcast.lane.b32.xlu0 %v1429, %s1454
    %v1456 = vpop.permute.xlu0 %1455
    %s1458 = sor.u32 256, 56
    %1459 = vbcast.lane.b32.xlu0 %v1429, %s1458
    %v1460 = vpop.permute.xlu0 %1459
    %s1462 = sor.u32 256, 64
    %1463 = vbcast.lane.b32.xlu0 %v1429, %s1462
    %v1464 = vpop.permute.xlu0 %1463
    %s1466 = sor.u32 256, 72
    %1467 = vbcast.lane.b32.xlu0 %v1429, %s1466
    %v1468 = vpop.permute.xlu0 %1467
    %s1470 = sor.u32 256, 80
    %1471 = vbcast.lane.b32.xlu0 %v1429, %s1470
    %v1472 = vpop.permute.xlu0 %1471
    %s1474 = sor.u32 256, 88
    %1475 = vbcast.lane.b32.xlu0 %v1429, %s1474
    %v1476 = vpop.permute.xlu0 %1475
    %s1478 = sor.u32 256, 96
    %1479 = vbcast.lane.b32.xlu0 %v1429, %s1478
    %v1480 = vpop.permute.xlu0 %1479
    %s1482 = sor.u32 256, 104
    %1483 = vbcast.lane.b32.xlu0 %v1429, %s1482
    %v1484 = vpop.permute.xlu0 %1483
    %s1486 = sor.u32 256, 112
    %1487 = vbcast.lane.b32.xlu0 %v1429, %s1486
    %v1488 = vpop.permute.xlu0 %1487
    %s1490 = sor.u32 256, 120
    %1491 = vbcast.lane.b32.xlu0 %v1429, %s1490
    %v1492 = vpop.permute.xlu0 %1491
    %v1493 = vlaneseq
    %v1494 = vshrl.u32 %v1493, 7
    %v1495 = vsub.s32 1, %v1494
    %v1496 = vrot.slane %v1425, %v1495
    %1498 = vbcast.lane.b32.xlu0 %v1496, 256
    %v1499 = vpop.permute.xlu0 %1498
    %s1501 = sor.u32 256, 8
    %1502 = vbcast.lane.b32.xlu0 %v1496, %s1501
    %v1503 = vpop.permute.xlu0 %1502
    %s1505 = sor.u32 256, 16
    %1506 = vbcast.lane.b32.xlu0 %v1496, %s1505
    %v1507 = vpop.permute.xlu0 %1506
    %s1509 = sor.u32 256, 24
    %1510 = vbcast.lane.b32.xlu0 %v1496, %s1509
    %v1511 = vpop.permute.xlu0 %1510
    %s1513 = sor.u32 256, 32
    %1514 = vbcast.lane.b32.xlu0 %v1496, %s1513
    %v1515 = vpop.permute.xlu0 %1514
    %s1517 = sor.u32 256, 40
    %1518 = vbcast.lane.b32.xlu0 %v1496, %s1517
    %v1519 = vpop.permute.xlu0 %1518
    %s1521 = sor.u32 256, 48
    %1522 = vbcast.lane.b32.xlu0 %v1496, %s1521
    %v1523 = vpop.permute.xlu0 %1522
    %s1525 = sor.u32 256, 56
    %1526 = vbcast.lane.b32.xlu0 %v1496, %s1525
    %v1527 = vpop.permute.xlu0 %1526
    %s1529 = sor.u32 256, 64
    %1530 = vbcast.lane.b32.xlu0 %v1496, %s1529
    %v1531 = vpop.permute.xlu0 %1530
    %s1533 = sor.u32 256, 72
    %1534 = vbcast.lane.b32.xlu0 %v1496, %s1533
    %v1535 = vpop.permute.xlu0 %1534
    %s1537 = sor.u32 256, 80
    %1538 = vbcast.lane.b32.xlu0 %v1496, %s1537
    %v1539 = vpop.permute.xlu0 %1538
    %s1541 = sor.u32 256, 88
    %1542 = vbcast.lane.b32.xlu0 %v1496, %s1541
    %v1543 = vpop.permute.xlu0 %1542
    %s1545 = sor.u32 256, 96
    %1546 = vbcast.lane.b32.xlu0 %v1496, %s1545
    %v1547 = vpop.permute.xlu0 %1546
    %s1549 = sor.u32 256, 104
    %1550 = vbcast.lane.b32.xlu0 %v1496, %s1549
    %v1551 = vpop.permute.xlu0 %1550
    %s1553 = sor.u32 256, 112
    %1554 = vbcast.lane.b32.xlu0 %v1496, %s1553
    %v1555 = vpop.permute.xlu0 %1554
    %s1557 = sor.u32 256, 120
    %1558 = vbcast.lane.b32.xlu0 %v1496, %s1557
    %v1559 = vpop.permute.xlu0 %1558
    %v1560 = vmul.f32 %v1432, %v1393
    %v1561 = vmul.f32 %v1436, %v1394
    %v1562 = vmul.f32 %v1440, %v1395
    %v1563 = vmul.f32 %v1444, %v1396
    %v1564 = vmul.f32 %v1448, %v1397
    %v1565 = vmul.f32 %v1452, %v1398
    %v1566 = vmul.f32 %v1456, %v1399
    %v1567 = vmul.f32 %v1460, %v1400
    %v1568 = vmul.f32 %v1464, %v1401
    %v1569 = vmul.f32 %v1468, %v1402
    %v1570 = vmul.f32 %v1472, %v1403
    %v1571 = vmul.f32 %v1476, %v1404
    %v1572 = vmul.f32 %v1480, %v1405
    %v1573 = vmul.f32 %v1484, %v1406
    %v1574 = vmul.f32 %v1488, %v1407
    %v1575 = vmul.f32 %v1492, %v1408
    %v1576 = vmul.f32 %v1499, %v1409
    %v1577 = vmul.f32 %v1503, %v1410
    %v1578 = vmul.f32 %v1507, %v1411
    %v1579 = vmul.f32 %v1511, %v1412
    %v1580 = vmul.f32 %v1515, %v1413
    %v1581 = vmul.f32 %v1519, %v1414
    %v1582 = vmul.f32 %v1523, %v1415
    %v1583 = vmul.f32 %v1527, %v1416
    %v1584 = vmul.f32 %v1531, %v1417
    %v1585 = vmul.f32 %v1535, %v1418
    %v1586 = vmul.f32 %v1539, %v1419
    %v1587 = vmul.f32 %v1543, %v1420
    %v1588 = vmul.f32 %v1547, %v1421
    %v1589 = vmul.f32 %v1551, %v1422
    %v1590 = vmul.f32 %v1555, %v1423
    %v1591 = vmul.f32 %v1559, %v1424
    %v1592 = vadd.f32 %v1560, %v1561
    %v1593 = vadd.f32 %v1592, %v1562
    %v1594 = vadd.f32 %v1593, %v1563
    %v1595 = vadd.f32 %v1594, %v1564
    %v1596 = vadd.f32 %v1595, %v1565
    %v1597 = vadd.f32 %v1596, %v1566
    %v1598 = vadd.f32 %v1597, %v1567
    %v1599 = vadd.f32 %v1598, %v1568
    %v1600 = vadd.f32 %v1599, %v1569
    %v1601 = vadd.f32 %v1600, %v1570
    %v1602 = vadd.f32 %v1601, %v1571
    %v1603 = vadd.f32 %v1602, %v1572
    %v1604 = vadd.f32 %v1603, %v1573
    %v1605 = vadd.f32 %v1604, %v1574
    %v1606 = vadd.f32 %v1605, %v1575
    %v1607 = vrot.slane %v1606, 4
    %v1608 = vadd.f32 %v1606, %v1607
    %v1609 = vrot.slane %v1608, 2
    %v1610 = vadd.f32 %v1608, %v1609
    %v1611 = vrot.slane %v1610, 1
    %v1612 = vadd.f32 %v1610, %v1611
    %v1613 = vadd.f32 %v1576, %v1577
    %v1614 = vadd.f32 %v1613, %v1578
    %v1615 = vadd.f32 %v1614, %v1579
    %v1616 = vadd.f32 %v1615, %v1580
    %v1617 = vadd.f32 %v1616, %v1581
    %v1618 = vadd.f32 %v1617, %v1582
    %v1619 = vadd.f32 %v1618, %v1583
    %v1620 = vadd.f32 %v1619, %v1584
    %v1621 = vadd.f32 %v1620, %v1585
    %v1622 = vadd.f32 %v1621, %v1586
    %v1623 = vadd.f32 %v1622, %v1587
    %v1624 = vadd.f32 %v1623, %v1588
    %v1625 = vadd.f32 %v1624, %v1589
    %v1626 = vadd.f32 %v1625, %v1590
    %v1627 = vadd.f32 %v1626, %v1591
    %v1628 = vrot.slane %v1627, 4
    %v1629 = vadd.f32 %v1627, %v1628
    %v1630 = vrot.slane %v1629, 2
    %v1631 = vadd.f32 %v1629, %v1630
    %v1632 = vrot.slane %v1631, 1
    %v1633 = vadd.f32 %v1631, %v1632
    %v1634 = vadd.f32 %v1612, 0.0
    %v1635 = vadd.f32 %v1633, 0.0
    %v1638 = vsel %vm454, %v1635, %v1634
    %1640 = vst [vmem:[#allocation6] sm:$0x3] %v1638
    // Predicated region
    $region18: #{tpu_custom_call.1} parent=1 // pred_check
      _
    $region19: #{tpu_custom_call.1} parent=1 // pred_check_branch
      %1642 = sbr.rel (0) target = $region21
    $region20: #{tpu_custom_call.1} parent=1 // pred_region
      %s1644 = ssub.s32 32, 32
      %1645 = vsyncadd [#allocation5], %s1644
      %s1647 = sshll.u32 [#allocation6], 4
      %s1648 = int_to_ptr.vmem [resolvable:$true] %s1647
      %1650 = dma.vmem_to_hbm [thread:$0]  %s1648, 32, %s3, [#allocation5]
    $region21: #{tpu_custom_call.1} parent=1 // pred_fallthru
      _
    // Predicated region
    $region22: #{tpu_custom_call.1} parent=1 // pred_check
      _
    $region23: #{tpu_custom_call.1} parent=1 // pred_check_branch
      %1652 = sbr.rel (0) target = $region25
    $region24: #{tpu_custom_call.1} parent=1 // pred_region
      %s1654 = ssub.s32 32, 32
      %1655 = vsyncadd [#allocation8], %s1654
      %s1657 = sshll.u32 [#allocation7], 4
      %s1658 = int_to_ptr.vmem [resolvable:$true] %s1657
      %1660 = dma.vmem_to_hbm [thread:$0]  %s1658, 32, %s4, [#allocation8]
    $region25: #{tpu_custom_call.1} parent=1 // pred_fallthru
      _
    // Predicated region
    $region26: #{tpu_custom_call.1} parent=1 // pred_check
      _
    $region27: #{tpu_custom_call.1} parent=1 // pred_check_branch
      %1662 = sbr.rel (0) target = $region29
    $region28: #{tpu_custom_call.1} parent=1 // pred_region
      %1663 = dma.done [#allocation5], 32
    $region29: #{tpu_custom_call.1} parent=1 // pred_fallthru
      _
    // Predicated region
    $region30: #{tpu_custom_call.1} parent=1 // pred_check
      _
    $region31: #{tpu_custom_call.1} parent=1 // pred_check_branch
      %1665 = sbr.rel (0) target = $region33
    $region32: #{tpu_custom_call.1} parent=1 // pred_region
      %1666 = dma.done [#allocation8], 32
    $region33: #{tpu_custom_call.1} parent=1 // pred_fallthru
      _
    %1667 = vsyncpa [#allocation4], 1
    %1668 = vsyncpa [#allocation5], 1
    %1669 = vsyncpa [#allocation8], 1

</llo_original>
